<compile_context>
chip_gen: v5e
topology: v5e:2x2
jax: 0.10.0
libtpu: 0.0.40
codegen_flags: <defaults>
</compile_context>

<pallas_src>
import functools

import jax
import jax.numpy as jnp
import numpy as np
from jax.experimental import pallas as pl
from jax.experimental.pallas import tpu as pltpu


# ------------------------------ Pallas kernel ------------------------------ #

def _bottleneck_kernel(x_ref, w1_ref, b1_ref, w2_ref, b2_ref, w3_ref, b3_ref,
                       o_ref, hs_ref, im_ref, *, W, halo, cp):
    """Fused Bottleneck forward for one image.

    Layout: channels on sublanes, flattened pixels (P = H*W) on lanes.

      x_ref  : (1, Cin, P)  input image block (also the residual)
      hs_ref : (3*cp, halo + P + halo) zero-haloed h1 staging scratch:
                 rows [0:cp]     h1 with source column W-1 zeroed (dj = -1 taps)
                 rows [cp:2cp]   h1                               (dj =  0 taps)
                 rows [2cp:3cp]  h1 with source column 0 zeroed   (dj = +1 taps)
      im_ref : (9*cp, P) im2col slab consumed by the single 3x3 contraction
    """
    P = o_ref.shape[2]
    cd = w1_ref.dtype                       # MXU operand dtype (f32 or bf16)

    # ---- conv1 (1x1, BN scale folded into w1) + bias + relu ----------------
    h1 = jnp.dot(w1_ref[...], x_ref[0].astype(cd),
                 preferred_element_type=jnp.float32)
    h1 = jnp.maximum(h1 + b1_ref[...], 0.0)                    # (cp, P) f32

    # ---- source-column masks for the horizontal (dj = +-1) taps ------------
    lane = jax.lax.broadcasted_iota(jnp.int32, (1, P), 1)
    if W & (W - 1) == 0:
        col = lane & (W - 1)
    else:
        col = lane % W  # TODO(synk): verify vector int-rem lowering for non-pow2 W
    h1_dl = jnp.where(col != (W - 1), h1, 0.0)   # feeds dj = -1 taps
    h1_dr = jnp.where(col != 0, h1, 0.0)         # feeds dj = +1 taps

    # ---- stage h1 variants into the zero-haloed scratch (aligned stores) ---
    zhalo = jnp.zeros((3 * cp, halo), jnp.float32)
    hs_ref[:, pl.ds(0, halo)] = zhalo
    hs_ref[:, pl.ds(halo + P, halo)] = zhalo
    hs_ref[pl.ds(0 * cp, cp), pl.ds(halo, P)] = h1_dl
    hs_ref[pl.ds(1 * cp, cp), pl.ds(halo, P)] = h1
    hs_ref[pl.ds(2 * cp, cp), pl.ds(halo, P)] = h1_dr

    # ---- build the (9*cp, P) im2col slab: tap k = 3*(di+1) + (dj+1) --------
    # Tap (di, dj) of output pixel q reads h1 pixel q + di*W + dj; vertical
    # out-of-image reads land in the zero halo, horizontal wrap is killed by
    # the pre-masked h1 copies.  Only static slices; stores are aligned.
    k = 0
    for di in (-1, 0, 1):
        for dj in (-1, 0, 1):
            shift = di * W + dj
            tap = hs_ref[pl.ds((dj + 1) * cp, cp), pl.ds(halo + shift, P)]
            im_ref[pl.ds(k * cp, cp), :] = tap
            k += 1

    # ---- conv2 (3x3, pad=1) as ONE K = 9*cp contraction + bias + relu ------
    h2 = jnp.dot(w2_ref[...], im_ref[...].astype(cd),
                 preferred_element_type=jnp.float32)
    h2 = jnp.maximum(h2 + b2_ref[...], 0.0)                    # (cp, P) f32

    # ---- conv3 (1x1) + bn3 + residual (x re-read from VMEM) + relu ---------
    h3 = jnp.dot(w3_ref[...], h2.astype(cd), preferred_element_type=jnp.float32)
    o_ref[0] = jnp.maximum(h3 + b3_ref[...] + x_ref[0], 0.0).astype(o_ref.dtype)


# --------------------------------- Glue ------------------------------------ #

def _fold_bn(gamma, beta, mean, var, eps):
    scale = gamma / jnp.sqrt(var + eps)
    return scale, beta - mean * scale


def bottleneck_pallas(x_nchw, params, *, eps=1e-5, matmul_dtype=jnp.float32):
    """Bottleneck forward (stride=1, downsample=None). x_nchw: (N, Cin, H, W)."""
    N, Cin, H, W = x_nchw.shape
    Cm = params["w1"].shape[0]
    Co = params["w3"].shape[0]
    assert Co == Cin, "residual add requires in_channels == expansion*out_channels"
    P = H * W
    CP = ((Cm + 7) // 8) * 8       # mid-channel dim padded to the f32 sublane tile
    HALO = 128                     # >= W + 1 and a lane multiple (aligned h1 store)

    s1, b1 = _fold_bn(*params["bn1"], eps)
    s2, b2 = _fold_bn(*params["bn2"], eps)
    s3, b3 = _fold_bn(*params["bn3"], eps)

    # Fold BN scale into conv weights, pad channel dims to CP, pack the 3x3
    # weights into im2col order (column = tap*CP + in_channel), cast matmul
    # operands to matmul_dtype (bf16 on v6e/v7x).  Biases stay f32 (epilogue f32).
    w1 = params["w1"][:, :, 0, 0] * s1[:, None]                        # (Cm, Cin)
    w1p = jnp.zeros((CP, Cin), jnp.float32).at[:Cm].set(w1)
    b1p = jnp.zeros((CP, 1), jnp.float32).at[:Cm, 0].set(b1)

    w2 = params["w2"] * s2[:, None, None, None]                        # (Cm, Cm, 3, 3)
    w2t = jnp.transpose(w2, (2, 3, 0, 1)).reshape(9, Cm, Cm)           # [k, o, i]
    w2p = jnp.zeros((9, CP, CP), jnp.float32).at[:, :Cm, :Cm].set(w2t)
    w2p = jnp.transpose(w2p, (1, 0, 2)).reshape(CP, 9 * CP)            # col = k*CP + i
    b2p = jnp.zeros((CP, 1), jnp.float32).at[:Cm, 0].set(b2)

    w3 = params["w3"][:, :, 0, 0] * s3[:, None]                        # (Co, Cm)
    w3p = jnp.zeros((Co, CP), jnp.float32).at[:, :Cm].set(w3)
    b3p = b3.reshape(Co, 1)

    w1p, w2p, w3p = (w.astype(matmul_dtype) for w in (w1p, w2p, w3p))

    # NCHW -> (N, C, P): channels on sublanes, pixels on lanes (pure reshape).
    x_r = x_nchw.reshape(N, Cin, P)

    # VMEM budget: double-buffered per-image I/O + weights + scratch, 4x margin,
    # floored at 8 MiB and capped at v7x's 64 MiB physical VMEM.
    itemsize = jnp.dtype(matmul_dtype).itemsize
    blk_bytes = 2 * (Cin * P * 4 + Co * P * 4)
    w_bytes = (w1p.size + w2p.size + w3p.size) * itemsize + (2 * CP + Co) * 4
    scratch_bytes = (3 * CP * (2 * HALO + P) + 9 * CP * P) * 4
    vmem_limit = int(min(max(4 * (blk_bytes + w_bytes + scratch_bytes), 8 * 2**20),
                         64 * 2**20))

    kernel = functools.partial(_bottleneck_kernel, W=W, halo=HALO, cp=CP)

    out = pl.pallas_call(
        kernel,
        out_shape=jax.ShapeDtypeStruct((N, Co, P), x_nchw.dtype),
        grid=(N,),
        in_specs=[
            pl.BlockSpec((1, Cin, P), lambda n: (n, 0, 0)),   # x (per image)
            pl.BlockSpec((CP, Cin), lambda n: (0, 0)),        # w1 (BN folded)
            pl.BlockSpec((CP, 1), lambda n: (0, 0)),          # b1
            pl.BlockSpec((CP, 9 * CP), lambda n: (0, 0)),     # w2 (im2col packed)
            pl.BlockSpec((CP, 1), lambda n: (0, 0)),          # b2
            pl.BlockSpec((Co, CP), lambda n: (0, 0)),         # w3
            pl.BlockSpec((Co, 1), lambda n: (0, 0)),          # b3
        ],
        out_specs=pl.BlockSpec((1, Co, P), lambda n: (n, 0, 0)),
        scratch_shapes=[
            pltpu.VMEM((3 * CP, 2 * HALO + P), jnp.float32),  # haloed h1 staging
            pltpu.VMEM((9 * CP, P), jnp.float32),             # im2col slab
        ],
        compiler_params=pltpu.CompilerParams(
            dimension_semantics=("parallel",),
            vmem_limit_bytes=vmem_limit,
        ),
    )(x_r, w1p, b1p, w2p, b2p, w3p, b3p)

    return out.reshape(N, Co, H, W)


# ----------------------------- pure-JAX reference --------------------------- #

def _conv(x, w, stride, pad):
    return jax.lax.conv_general_dilated(
        x, w, (stride, stride), [(pad, pad), (pad, pad)],
        dimension_numbers=("NCHW", "OIHW", "NCHW"),
        precision=jax.lax.Precision.HIGHEST)


def _bn(x, gamma, beta, mean, var, eps=1e-5):
    scale = gamma / jnp.sqrt(var + eps)
    shift = beta - mean * scale
    return x * scale[None, :, None, None] + shift[None, :, None, None]


def bottleneck_ref(x, p):
    out = jax.nn.relu(_bn(_conv(x, p["w1"], 1, 0), *p["bn1"]))
    out = jax.nn.relu(_bn(_conv(out, p["w2"], 1, 1), *p["bn2"]))
    out = _bn(_conv(out, p["w3"], 1, 0), *p["bn3"])
    return jax.nn.relu(out + x)


# ---------------------------------- main ------------------------------------ #

if __name__ == "__main__":
    # Bottleneck(in_channels=16, out_channels=4, stride=1, downsample=None)
    N, H, W = 4, 16, 16          # batch 4 -> >=2 grid steps per v7x core
    c_in, c_mid = 16, 4
    c_out = c_mid * 4            # expansion = 4  (== c_in => residual add valid)

    key = jax.random.PRNGKey(0)
    ks = jax.random.split(key, 8)

    def bn_params(k, c):
        k1, k2, k3, k4 = jax.random.split(k, 4)
        gamma = 1.0 + 0.1 * jax.random.normal(k1, (c,), jnp.float32)
        beta = 0.1 * jax.random.normal(k2, (c,), jnp.float32)
        mean = 0.1 * jax.random.normal(k3, (c,), jnp.float32)
        var = jax.random.uniform(k4, (c,), jnp.float32, 0.5, 1.5)
        return (gamma, beta, mean, var)

    params = {
        "w1": 0.2 * jax.random.normal(ks[0], (c_mid, c_in, 1, 1), jnp.float32),
        "bn1": bn_params(ks[1], c_mid),
        "w2": 0.2 * jax.random.normal(ks[2], (c_mid, c_mid, 3, 3), jnp.float32),
        "bn2": bn_params(ks[3], c_mid),
        "w3": 0.2 * jax.random.normal(ks[4], (c_out, c_mid, 1, 1), jnp.float32),
        "bn3": bn_params(ks[5], c_out),
    }

    x = jax.random.normal(ks[6], (N, c_in, H, W), jnp.float32)  # NCHW (PyTorch)

    ref = jax.block_until_ready(bottleneck_ref(x, params))

    # f32 MXU operands: tight correctness gate.
    fwd_f32 = jax.jit(functools.partial(bottleneck_pallas, matmul_dtype=jnp.float32))
    out_f32 = jax.block_until_ready(fwd_f32(x, params))
    if not np.allclose(np.asarray(out_f32), np.asarray(ref), rtol=1e-3, atol=1e-3):
        err = float(np.max(np.abs(np.asarray(out_f32) - np.asarray(ref))))
        raise AssertionError(
            f"Pallas Bottleneck (f32) mismatch vs JAX reference (max abs err {err:.3e})")

    # bf16 MXU operands (v6e/v7x perf mode), f32 accumulate + f32 epilogue:
    # loose sanity bound (bf16 rounding is amplified by the BN-folded weights).
    fwd_bf16 = jax.jit(functools.partial(bottleneck_pallas, matmul_dtype=jnp.bfloat16))
    out_bf16 = jax.block_until_ready(fwd_bf16(x, params))
    err_bf16 = float(np.max(np.abs(np.asarray(out_bf16) - np.asarray(ref))))
    if not np.isfinite(err_bf16) or err_bf16 > 0.25:
        raise AssertionError(
            f"Pallas Bottleneck (bf16) mismatch vs JAX reference (max abs err {err_bf16:.3e})")

    print("KERNEL_OK")
</pallas_src>

<mosaic_0001>
module attributes {stable_mosaic.version = 11 : i64} {
  func.func @_bottleneck_kernel(%arg0: i32, %arg1: memref<1x16x256xf32, #tpu.memory_space<vmem>>, %arg2: memref<8x16xf32, #tpu.memory_space<vmem>>, %arg3: memref<8x1xf32, #tpu.memory_space<vmem>>, %arg4: memref<8x72xf32, #tpu.memory_space<vmem>>, %arg5: memref<8x1xf32, #tpu.memory_space<vmem>>, %arg6: memref<16x8xf32, #tpu.memory_space<vmem>>, %arg7: memref<16x1xf32, #tpu.memory_space<vmem>>, %arg8: memref<1x16x256xf32, #tpu.memory_space<vmem>>, %arg9: memref<24x512xf32, #tpu.memory_space<vmem>>, %arg10: memref<72x256xf32, #tpu.memory_space<vmem>>) attributes {dimension_semantics = [#tpu.dimension_semantics<parallel>], iteration_bounds = array<i64: 4>, scalar_prefetch = 0 : i64, scratch_operands = 2 : i64, tpu.core_type = #tpu.core_type<tc>, window_params = [{transform_indices = @transform_0, window_bounds = array<i64: 1, 16, 256>}, {pipeline_mode = #tpu.pipeline_mode<synchronous>, transform_indices = @transform_1, window_bounds = array<i64: 8, 16>}, {pipeline_mode = #tpu.pipeline_mode<synchronous>, transform_indices = @transform_2, window_bounds = array<i64: 8, 1>}, {pipeline_mode = #tpu.pipeline_mode<synchronous>, transform_indices = @transform_3, window_bounds = array<i64: 8, 72>}, {pipeline_mode = #tpu.pipeline_mode<synchronous>, transform_indices = @transform_4, window_bounds = array<i64: 8, 1>}, {pipeline_mode = #tpu.pipeline_mode<synchronous>, transform_indices = @transform_5, window_bounds = array<i64: 16, 8>}, {pipeline_mode = #tpu.pipeline_mode<synchronous>, transform_indices = @transform_6, window_bounds = array<i64: 16, 1>}, {transform_indices = @transform_7, window_bounds = array<i64: 1, 16, 256>}]} {
    %c0 = arith.constant 0 : index
    %c0_0 = arith.constant 0 : index
    %0 = vector.load %arg2[%c0, %c0_0] : memref<8x16xf32, #tpu.memory_space<vmem>>, vector<8x16xf32>
    %c0_1 = arith.constant 0 : index
    %c0_2 = arith.constant 0 : index
    %c0_3 = arith.constant 0 : index
    %1 = vector.load %arg1[%c0_1, %c0_2, %c0_3] : memref<1x16x256xf32, #tpu.memory_space<vmem>>, vector<1x16x256xf32>
    %2 = vector.shape_cast %1 : vector<1x16x256xf32> to vector<16x256xf32>
    %cst = arith.constant dense<0.000000e+00> : vector<8x256xf32>
    %3 = tpu.matmul %0, %2, %cst {dimension_numbers = #tpu.dot_dimension_numbers<[1], [0], [0], [1], [0, 0, 1, 1], [], []>} : vector<8x16xf32>, vector<16x256xf32>, vector<8x256xf32> -> vector<8x256xf32>
    %c0_4 = arith.constant 0 : index
    %c0_5 = arith.constant 0 : index
    %4 = vector.load %arg3[%c0_4, %c0_5] : memref<8x1xf32, #tpu.memory_space<vmem>>, vector<8x1xf32>
    %5 = vector.broadcast %4 : vector<8x1xf32> to vector<8x256xf32>
    %6 = arith.addf %3, %5 : vector<8x256xf32>
    %cst_6 = arith.constant 0.000000e+00 : f32
    %7 = vector.broadcast %cst_6 : f32 to vector<8x256xf32>
    %8 = arith.maximumf %6, %7 : vector<8x256xf32>
    %9 = tpu.iota {dimensions = array<i32: 1>} : vector<1x256xi32>
    %c15_i32 = arith.constant 15 : i32
    %10 = vector.broadcast %c15_i32 : i32 to vector<1x256xi32>
    %11 = arith.andi %9, %10 : vector<1x256xi32>
    %c15_i32_7 = arith.constant 15 : i32
    %12 = vector.broadcast %c15_i32_7 : i32 to vector<1x256xi32>
    %13 = arith.cmpi ne, %11, %12 : vector<1x256xi32>
    %cst_8 = arith.constant 0.000000e+00 : f32
    %14 = vector.shape_cast %13 : vector<1x256xi1> to vector<1x256xi1>
    %15 = vector.broadcast %14 : vector<1x256xi1> to vector<8x256xi1>
    %16 = vector.broadcast %cst_8 : f32 to vector<8x256xf32>
    %17 = arith.select %15, %8, %16 : vector<8x256xi1>, vector<8x256xf32>
    %c0_i32 = arith.constant 0 : i32
    %18 = vector.broadcast %c0_i32 : i32 to vector<1x256xi32>
    %19 = arith.cmpi ne, %11, %18 : vector<1x256xi32>
    %cst_9 = arith.constant 0.000000e+00 : f32
    %20 = vector.shape_cast %19 : vector<1x256xi1> to vector<1x256xi1>
    %21 = vector.broadcast %20 : vector<1x256xi1> to vector<8x256xi1>
    %22 = vector.broadcast %cst_9 : f32 to vector<8x256xf32>
    %23 = arith.select %21, %8, %22 : vector<8x256xi1>, vector<8x256xf32>
    %cst_10 = arith.constant 0.000000e+00 : f32
    %24 = vector.broadcast %cst_10 : f32 to vector<24x128xf32>
    %c0_11 = arith.constant 0 : index
    %c0_12 = arith.constant 0 : index
    %25 = vector.load %arg9[%c0_11, %c0_12] : memref<24x512xf32, #tpu.memory_space<vmem>>, vector<24x128xf32>
    tpu.vector_store %arg9[%c0_11, %c0_12], %24 {strides = array<i32>} : memref<24x512xf32, #tpu.memory_space<vmem>>, vector<24x128xf32>,
    %c0_13 = arith.constant 0 : index
    %c384 = arith.constant 384 : index
    %26 = vector.load %arg9[%c0_13, %c384] : memref<24x512xf32, #tpu.memory_space<vmem>>, vector<24x128xf32>
    tpu.vector_store %arg9[%c0_13, %c384], %24 {strides = array<i32>} : memref<24x512xf32, #tpu.memory_space<vmem>>, vector<24x128xf32>,
    %c0_14 = arith.constant 0 : index
    %c128 = arith.constant 128 : index
    %27 = vector.load %arg9[%c0_14, %c128] : memref<24x512xf32, #tpu.memory_space<vmem>>, vector<8x256xf32>
    tpu.vector_store %arg9[%c0_14, %c128], %17 {strides = array<i32>} : memref<24x512xf32, #tpu.memory_space<vmem>>, vector<8x256xf32>,
    %c8 = arith.constant 8 : index
    %c128_15 = arith.constant 128 : index
    %28 = vector.load %arg9[%c8, %c128_15] : memref<24x512xf32, #tpu.memory_space<vmem>>, vector<8x256xf32>
    tpu.vector_store %arg9[%c8, %c128_15], %8 {strides = array<i32>} : memref<24x512xf32, #tpu.memory_space<vmem>>, vector<8x256xf32>,
    %c16 = arith.constant 16 : index
    %c128_16 = arith.constant 128 : index
    %29 = vector.load %arg9[%c16, %c128_16] : memref<24x512xf32, #tpu.memory_space<vmem>>, vector<8x256xf32>
    tpu.vector_store %arg9[%c16, %c128_16], %23 {strides = array<i32>} : memref<24x512xf32, #tpu.memory_space<vmem>>, vector<8x256xf32>,
    %c0_17 = arith.constant 0 : index
    %c111 = arith.constant 111 : index
    %30 = vector.load %arg9[%c0_17, %c111] : memref<24x512xf32, #tpu.memory_space<vmem>>, vector<8x256xf32>
    %c0_18 = arith.constant 0 : index
    %c0_19 = arith.constant 0 : index
    %31 = vector.load %arg10[%c0_18, %c0_19] : memref<72x256xf32, #tpu.memory_space<vmem>>, vector<8x256xf32>
    tpu.vector_store %arg10[%c0_18, %c0_19], %30 {strides = array<i32>} : memref<72x256xf32, #tpu.memory_space<vmem>>, vector<8x256xf32>,
    %c8_20 = arith.constant 8 : index
    %c112 = arith.constant 112 : index
    %32 = vector.load %arg9[%c8_20, %c112] : memref<24x512xf32, #tpu.memory_space<vmem>>, vector<8x256xf32>
    %c8_21 = arith.constant 8 : index
    %c0_22 = arith.constant 0 : index
    %33 = vector.load %arg10[%c8_21, %c0_22] : memref<72x256xf32, #tpu.memory_space<vmem>>, vector<8x256xf32>
    tpu.vector_store %arg10[%c8_21, %c0_22], %32 {strides = array<i32>} : memref<72x256xf32, #tpu.memory_space<vmem>>, vector<8x256xf32>,
    %c16_23 = arith.constant 16 : index
    %c113 = arith.constant 113 : index
    %34 = vector.load %arg9[%c16_23, %c113] : memref<24x512xf32, #tpu.memory_space<vmem>>, vector<8x256xf32>
    %c16_24 = arith.constant 16 : index
    %c0_25 = arith.constant 0 : index
    %35 = vector.load %arg10[%c16_24, %c0_25] : memref<72x256xf32, #tpu.memory_space<vmem>>, vector<8x256xf32>
    tpu.vector_store %arg10[%c16_24, %c0_25], %34 {strides = array<i32>} : memref<72x256xf32, #tpu.memory_space<vmem>>, vector<8x256xf32>,
    %c0_26 = arith.constant 0 : index
    %c127 = arith.constant 127 : index
    %36 = vector.load %arg9[%c0_26, %c127] : memref<24x512xf32, #tpu.memory_space<vmem>>, vector<8x256xf32>
    %c24 = arith.constant 24 : index
    %c0_27 = arith.constant 0 : index
    %37 = vector.load %arg10[%c24, %c0_27] : memref<72x256xf32, #tpu.memory_space<vmem>>, vector<8x256xf32>
    tpu.vector_store %arg10[%c24, %c0_27], %36 {strides = array<i32>} : memref<72x256xf32, #tpu.memory_space<vmem>>, vector<8x256xf32>,
    %c8_28 = arith.constant 8 : index
    %c128_29 = arith.constant 128 : index
    %38 = vector.load %arg9[%c8_28, %c128_29] : memref<24x512xf32, #tpu.memory_space<vmem>>, vector<8x256xf32>
    %c32 = arith.constant 32 : index
    %c0_30 = arith.constant 0 : index
    %39 = vector.load %arg10[%c32, %c0_30] : memref<72x256xf32, #tpu.memory_space<vmem>>, vector<8x256xf32>
    tpu.vector_store %arg10[%c32, %c0_30], %38 {strides = array<i32>} : memref<72x256xf32, #tpu.memory_space<vmem>>, vector<8x256xf32>,
    %c16_31 = arith.constant 16 : index
    %c129 = arith.constant 129 : index
    %40 = vector.load %arg9[%c16_31, %c129] : memref<24x512xf32, #tpu.memory_space<vmem>>, vector<8x256xf32>
    %c40 = arith.constant 40 : index
    %c0_32 = arith.constant 0 : index
    %41 = vector.load %arg10[%c40, %c0_32] : memref<72x256xf32, #tpu.memory_space<vmem>>, vector<8x256xf32>
    tpu.vector_store %arg10[%c40, %c0_32], %40 {strides = array<i32>} : memref<72x256xf32, #tpu.memory_space<vmem>>, vector<8x256xf32>,
    %c0_33 = arith.constant 0 : index
    %c143 = arith.constant 143 : index
    %42 = vector.load %arg9[%c0_33, %c143] : memref<24x512xf32, #tpu.memory_space<vmem>>, vector<8x256xf32>
    %c48 = arith.constant 48 : index
    %c0_34 = arith.constant 0 : index
    %43 = vector.load %arg10[%c48, %c0_34] : memref<72x256xf32, #tpu.memory_space<vmem>>, vector<8x256xf32>
    tpu.vector_store %arg10[%c48, %c0_34], %42 {strides = array<i32>} : memref<72x256xf32, #tpu.memory_space<vmem>>, vector<8x256xf32>,
    %c8_35 = arith.constant 8 : index
    %c144 = arith.constant 144 : index
    %44 = vector.load %arg9[%c8_35, %c144] : memref<24x512xf32, #tpu.memory_space<vmem>>, vector<8x256xf32>
    %c56 = arith.constant 56 : index
    %c0_36 = arith.constant 0 : index
    %45 = vector.load %arg10[%c56, %c0_36] : memref<72x256xf32, #tpu.memory_space<vmem>>, vector<8x256xf32>
    tpu.vector_store %arg10[%c56, %c0_36], %44 {strides = array<i32>} : memref<72x256xf32, #tpu.memory_space<vmem>>, vector<8x256xf32>,
    %c16_37 = arith.constant 16 : index
    %c145 = arith.constant 145 : index
    %46 = vector.load %arg9[%c16_37, %c145] : memref<24x512xf32, #tpu.memory_space<vmem>>, vector<8x256xf32>
    %c64 = arith.constant 64 : index
    %c0_38 = arith.constant 0 : index
    %47 = vector.load %arg10[%c64, %c0_38] : memref<72x256xf32, #tpu.memory_space<vmem>>, vector<8x256xf32>
    tpu.vector_store %arg10[%c64, %c0_38], %46 {strides = array<i32>} : memref<72x256xf32, #tpu.memory_space<vmem>>, vector<8x256xf32>,
    %c0_39 = arith.constant 0 : index
    %c0_40 = arith.constant 0 : index
    %48 = vector.load %arg4[%c0_39, %c0_40] : memref<8x72xf32, #tpu.memory_space<vmem>>, vector<8x72xf32>
    %c0_41 = arith.constant 0 : index
    %c0_42 = arith.constant 0 : index
    %49 = vector.load %arg10[%c0_41, %c0_42] : memref<72x256xf32, #tpu.memory_space<vmem>>, vector<72x256xf32>
    %cst_43 = arith.constant dense<0.000000e+00> : vector<8x256xf32>
    %50 = tpu.matmul %48, %49, %cst_43 {dimension_numbers = #tpu.dot_dimension_numbers<[1], [0], [0], [1], [0, 0, 1, 1], [], []>} : vector<8x72xf32>, vector<72x256xf32>, vector<8x256xf32> -> vector<8x256xf32>
    %c0_44 = arith.constant 0 : index
    %c0_45 = arith.constant 0 : index
    %51 = vector.load %arg5[%c0_44, %c0_45] : memref<8x1xf32, #tpu.memory_space<vmem>>, vector<8x1xf32>
    %52 = vector.broadcast %51 : vector<8x1xf32> to vector<8x256xf32>
    %53 = arith.addf %50, %52 : vector<8x256xf32>
    %cst_46 = arith.constant 0.000000e+00 : f32
    %54 = vector.broadcast %cst_46 : f32 to vector<8x256xf32>
    %55 = arith.maximumf %53, %54 : vector<8x256xf32>
    %c0_47 = arith.constant 0 : index
    %c0_48 = arith.constant 0 : index
    %56 = vector.load %arg6[%c0_47, %c0_48] : memref<16x8xf32, #tpu.memory_space<vmem>>, vector<16x8xf32>
    %cst_49 = arith.constant dense<0.000000e+00> : vector<16x256xf32>
    %57 = tpu.matmul %56, %55, %cst_49 {dimension_numbers = #tpu.dot_dimension_numbers<[1], [0], [0], [1], [0, 0, 1, 1], [], []>} : vector<16x8xf32>, vector<8x256xf32>, vector<16x256xf32> -> vector<16x256xf32>
    %c0_50 = arith.constant 0 : index
    %c0_51 = arith.constant 0 : index
    %58 = vector.load %arg7[%c0_50, %c0_51] : memref<16x1xf32, #tpu.memory_space<vmem>>, vector<16x1xf32>
    %59 = vector.broadcast %58 : vector<16x1xf32> to vector<16x256xf32>
    %60 = arith.addf %57, %59 : vector<16x256xf32>
    %c0_52 = arith.constant 0 : index
    %c0_53 = arith.constant 0 : index
    %c0_54 = arith.constant 0 : index
    %61 = vector.load %arg1[%c0_52, %c0_53, %c0_54] : memref<1x16x256xf32, #tpu.memory_space<vmem>>, vector<1x16x256xf32>
    %62 = vector.shape_cast %61 : vector<1x16x256xf32> to vector<16x256xf32>
    %63 = arith.addf %60, %62 : vector<16x256xf32>
    %cst_55 = arith.constant 0.000000e+00 : f32
    %64 = vector.broadcast %cst_55 : f32 to vector<16x256xf32>
    %65 = arith.maximumf %63, %64 : vector<16x256xf32>
    %c0_56 = arith.constant 0 : index
    %c0_57 = arith.constant 0 : index
    %c0_58 = arith.constant 0 : index
    %66 = vector.load %arg8[%c0_56, %c0_57, %c0_58] : memref<1x16x256xf32, #tpu.memory_space<vmem>>, vector<1x16x256xf32>
    %67 = vector.shape_cast %66 : vector<1x16x256xf32> to vector<16x256xf32>
    %68 = vector.shape_cast %65 : vector<16x256xf32> to vector<1x16x256xf32>
    tpu.vector_store %arg8[%c0_56, %c0_57, %c0_58], %68 {strides = array<i32>} : memref<1x16x256xf32, #tpu.memory_space<vmem>>, vector<1x16x256xf32>,
    return
  }
  func.func @transform_0(%arg0: i32) -> (i32, i32, i32) {
    %c0_i32 = arith.constant 0 : i32
    %c0_i32_0 = arith.constant 0 : i32
    %c0_i32_1 = arith.constant 0 : i32
    return %arg0, %c0_i32, %c0_i32_0 : i32, i32, i32
  }
  func.func @transform_1(%arg0: i32) -> (i32, i32) {
    %c0_i32 = arith.constant 0 : i32
    %c0_i32_0 = arith.constant 0 : i32
    %c0_i32_1 = arith.constant 0 : i32
    return %c0_i32, %c0_i32_0 : i32, i32
  }
  func.func @transform_2(%arg0: i32) -> (i32, i32) {
    %c0_i32 = arith.constant 0 : i32
    %c0_i32_0 = arith.constant 0 : i32
    %c0_i32_1 = arith.constant 0 : i32
    return %c0_i32, %c0_i32_0 : i32, i32
  }
  func.func @transform_3(%arg0: i32) -> (i32, i32) {
    %c0_i32 = arith.constant 0 : i32
    %c0_i32_0 = arith.constant 0 : i32
    %c0_i32_1 = arith.constant 0 : i32
    return %c0_i32, %c0_i32_0 : i32, i32
  }
  func.func @transform_4(%arg0: i32) -> (i32, i32) {
    %c0_i32 = arith.constant 0 : i32
    %c0_i32_0 = arith.constant 0 : i32
    %c0_i32_1 = arith.constant 0 : i32
    return %c0_i32, %c0_i32_0 : i32, i32
  }
  func.func @transform_5(%arg0: i32) -> (i32, i32) {
    %c0_i32 = arith.constant 0 : i32
    %c0_i32_0 = arith.constant 0 : i32
    %c0_i32_1 = arith.constant 0 : i32
    return %c0_i32, %c0_i32_0 : i32, i32
  }
  func.func @transform_6(%arg0: i32) -> (i32, i32) {
    %c0_i32 = arith.constant 0 : i32
    %c0_i32_0 = arith.constant 0 : i32
    %c0_i32_1 = arith.constant 0 : i32
    return %c0_i32, %c0_i32_0 : i32, i32
  }
  func.func @transform_7(%arg0: i32) -> (i32, i32, i32) {
    %c0_i32 = arith.constant 0 : i32
    %c0_i32_0 = arith.constant 0 : i32
    %c0_i32_1 = arith.constant 0 : i32
    return %arg0, %c0_i32, %c0_i32_0 : i32, i32, i32
  }
}

</mosaic_0001>

<llo_original>
// kernel: bottleneck_pallas.1
$region0: #{bottleneck_pallas.1}
  #allocation0 [shape = 'u32[]', space=smem, size = 0x4, offset = 0x4, fixed_abs, tag = 'smem constant byte address 0x4 - core index']
  #allocation1 [shape = 'u32[72,128]{1,0:T(1,128)}', space=vmem, size = 0x9000, scoped, tag = 'internal scratch']
  #allocation2 [shape = 'f32[24,512]{1,0:T(8,128)}', space=vmem, size = 0xc000, scoped, tag = 'scratch operand']
  #allocation3 [shape = 'f32[72,256]{1,0:T(8,128)}', space=vmem, size = 0x12000, scoped, tag = 'scratch operand']
  %s0 = inlined_call_operand.vmem [shape: f32[4,16,256], index: 0, kind: input, shape index: {}]
  %s1 = inlined_call_operand.vmem [shape: f32[8,16], index: 1, kind: input, shape index: {}]
  %s2 = inlined_call_operand.vmem [shape: f32[8,1], index: 2, kind: input, shape index: {}]
  %s3 = inlined_call_operand.vmem [shape: f32[8,72], index: 3, kind: input, shape index: {}]
  %s4 = inlined_call_operand.vmem [shape: f32[8,1], index: 4, kind: input, shape index: {}]
  %s5 = inlined_call_operand.vmem [shape: f32[16,8], index: 5, kind: input, shape index: {}]
  %s6 = inlined_call_operand.vmem [shape: f32[16,1], index: 6, kind: input, shape index: {}]
  %s7 = inlined_call_operand.vmem [shape: f32[4,16,256], index: 7, kind: output, shape index: {}]
  %s8 = sld [smem:[#allocation0]]
  $region61: #{bottleneck_pallas.1} parent=0
    _
  %s10 = ssub.s32 1, %s8
  %s11 = scalar_select 0, %s10, %s8
  loop: start=0, step=1, limit=6
  $region2: #{bottleneck_pallas.1} parent=0 // loop_pre_header
    _
  $region3: #{bottleneck_pallas.1} parent=0 // loop_header
    %s13 = sphi 0, %s17
    %p14 = scmp.ge.s32.totalorder %s13, 6
    %s23 = sphi 0, %s25
    %s26 = sphi 0, %s23
    %s27 = sphi 0, %s26
    %s43 = sphi 0, %s27
    %s47 = sphi 0, %s47
    %s49 = sphi 0, %s47
    %s50 = sphi 0, %s49
    %s64 = sphi 0, %s50
    %s68 = sphi 0, %s68
    %s70 = sphi 0, %s68
    %s71 = sphi 0, %s70
    %s85 = sphi 0, %s71
    %s89 = sphi 0, %s89
    %s91 = sphi 0, %s89
    %s92 = sphi 0, %s91
    %s106 = sphi 0, %s92
    %s110 = sphi 0, %s110
    %s112 = sphi 0, %s110
    %s113 = sphi 0, %s112
    %s127 = sphi 0, %s113
    %s131 = sphi 0, %s131
    %s133 = sphi 0, %s131
    %s134 = sphi 0, %s133
    %s148 = sphi 0, %s134
    %s152 = sphi 0, %s152
    %s154 = sphi 0, %s152
    %s155 = sphi 0, %s154
    %s169 = sphi 0, %s155
    %s175 = sphi 0, %s177
    %s178 = sphi 0, %s175
    %s179 = sphi 0, %s178
    %s195 = sphi 0, %s179
  $region4: #{bottleneck_pallas.1} parent=0 // loop_header_branch
    %16 = sbr.rel (%p14) target = $region8
  $region5: #{bottleneck_pallas.1} parent=0 // loop_body
    %s18 = ssub.s32 %s13, 1
    %s19 = ssub.s32 %s13, 2
    %s20 = sadd.s32 %s13, 1
    %s21 = ssub.s32 %s13, %s20
    %p22 = scmp.eq.s32.totalorder %s21, 0
    %s24 = sadd.s32 %s23, 1
    %s25 = scalar_select %p22, %s23, %s24
    %p28 = pneg %p22
    %p29 = scmp.eq.s32.totalorder %s13, 3
    %p30 = por %p28, %p29
    %p31 = scmp.ne.s32.totalorder %s23, %s26
    %p32 = scmp.eq.s32.totalorder %s13, 0
    %p33 = por %p31, %p32
    %p34 = scmp.ne.s32.totalorder %s23, %s26
    %p35 = scmp.eq.s32.totalorder %s18, 3
    %p36 = por %p34, %p35
    %p37 = scmp.ne.s32.totalorder %s26, %s27
    %p38 = scmp.eq.s32.totalorder %s18, 0
    %p39 = por %p37, %p38
    %p40 = scmp.ne.s32.totalorder %s26, %s27
    %p41 = scmp.eq.s32.totalorder %s19, 3
    %p42 = por %p40, %p41
    %p44 = scmp.ne.s32.totalorder %s27, %s43
    %p45 = scmp.eq.s32.totalorder %s19, 0
    %p46 = por %p44, %p45
    %s48 = sadd.s32 %s47, 1
    %p51 = scmp.eq.s32.totalorder %s13, 3
    %p52 = scmp.ne.s32.totalorder %s47, %s49
    %p53 = scmp.eq.s32.totalorder %s13, 0
    %p54 = por %p52, %p53
    %p55 = scmp.ne.s32.totalorder %s47, %s49
    %p56 = scmp.eq.s32.totalorder %s18, 3
    %p57 = por %p55, %p56
    %p58 = scmp.ne.s32.totalorder %s49, %s50
    %p59 = scmp.eq.s32.totalorder %s18, 0
    %p60 = por %p58, %p59
    %p61 = scmp.ne.s32.totalorder %s49, %s50
    %p62 = scmp.eq.s32.totalorder %s19, 3
    %p63 = por %p61, %p62
    %p65 = scmp.ne.s32.totalorder %s50, %s64
    %p66 = scmp.eq.s32.totalorder %s19, 0
    %p67 = por %p65, %p66
    %s69 = sadd.s32 %s68, 1
    %p72 = scmp.eq.s32.totalorder %s13, 3
    %p73 = scmp.ne.s32.totalorder %s68, %s70
    %p74 = scmp.eq.s32.totalorder %s13, 0
    %p75 = por %p73, %p74
    %p76 = scmp.ne.s32.totalorder %s68, %s70
    %p77 = scmp.eq.s32.totalorder %s18, 3
    %p78 = por %p76, %p77
    %p79 = scmp.ne.s32.totalorder %s70, %s71
    %p80 = scmp.eq.s32.totalorder %s18, 0
    %p81 = por %p79, %p80
    %p82 = scmp.ne.s32.totalorder %s70, %s71
    %p83 = scmp.eq.s32.totalorder %s19, 3
    %p84 = por %p82, %p83
    %p86 = scmp.ne.s32.totalorder %s71, %s85
    %p87 = scmp.eq.s32.totalorder %s19, 0
    %p88 = por %p86, %p87
    %s90 = sadd.s32 %s89, 1
    %p93 = scmp.eq.s32.totalorder %s13, 3
    %p94 = scmp.ne.s32.totalorder %s89, %s91
    %p95 = scmp.eq.s32.totalorder %s13, 0
    %p96 = por %p94, %p95
    %p97 = scmp.ne.s32.totalorder %s89, %s91
    %p98 = scmp.eq.s32.totalorder %s18, 3
    %p99 = por %p97, %p98
    %p100 = scmp.ne.s32.totalorder %s91, %s92
    %p101 = scmp.eq.s32.totalorder %s18, 0
    %p102 = por %p100, %p101
    %p103 = scmp.ne.s32.totalorder %s91, %s92
    %p104 = scmp.eq.s32.totalorder %s19, 3
    %p105 = por %p103, %p104
    %p107 = scmp.ne.s32.totalorder %s92, %s106
    %p108 = scmp.eq.s32.totalorder %s19, 0
    %p109 = por %p107, %p108
    %s111 = sadd.s32 %s110, 1
    %p114 = scmp.eq.s32.totalorder %s13, 3
    %p115 = scmp.ne.s32.totalorder %s110, %s112
    %p116 = scmp.eq.s32.totalorder %s13, 0
    %p117 = por %p115, %p116
    %p118 = scmp.ne.s32.totalorder %s110, %s112
    %p119 = scmp.eq.s32.totalorder %s18, 3
    %p120 = por %p118, %p119
    %p121 = scmp.ne.s32.totalorder %s112, %s113
    %p122 = scmp.eq.s32.totalorder %s18, 0
    %p123 = por %p121, %p122
    %p124 = scmp.ne.s32.totalorder %s112, %s113
    %p125 = scmp.eq.s32.totalorder %s19, 3
    %p126 = por %p124, %p125
    %p128 = scmp.ne.s32.totalorder %s113, %s127
    %p129 = scmp.eq.s32.totalorder %s19, 0
    %p130 = por %p128, %p129
    %s132 = sadd.s32 %s131, 1
    %p135 = scmp.eq.s32.totalorder %s13, 3
    %p136 = scmp.ne.s32.totalorder %s131, %s133
    %p137 = scmp.eq.s32.totalorder %s13, 0
    %p138 = por %p136, %p137
    %p139 = scmp.ne.s32.totalorder %s131, %s133
    %p140 = scmp.eq.s32.totalorder %s18, 3
    %p141 = por %p139, %p140
    %p142 = scmp.ne.s32.totalorder %s133, %s134
    %p143 = scmp.eq.s32.totalorder %s18, 0
    %p144 = por %p142, %p143
    %p145 = scmp.ne.s32.totalorder %s133, %s134
    %p146 = scmp.eq.s32.totalorder %s19, 3
    %p147 = por %p145, %p146
    %p149 = scmp.ne.s32.totalorder %s134, %s148
    %p150 = scmp.eq.s32.totalorder %s19, 0
    %p151 = por %p149, %p150
    %s153 = sadd.s32 %s152, 1
    %p156 = scmp.eq.s32.totalorder %s13, 3
    %p157 = scmp.ne.s32.totalorder %s152, %s154
    %p158 = scmp.eq.s32.totalorder %s13, 0
    %p159 = por %p157, %p158
    %p160 = scmp.ne.s32.totalorder %s152, %s154
    %p161 = scmp.eq.s32.totalorder %s18, 3
    %p162 = por %p160, %p161
    %p163 = scmp.ne.s32.totalorder %s154, %s155
    %p164 = scmp.eq.s32.totalorder %s18, 0
    %p165 = por %p163, %p164
    %p166 = scmp.ne.s32.totalorder %s154, %s155
    %p167 = scmp.eq.s32.totalorder %s19, 3
    %p168 = por %p166, %p167
    %p170 = scmp.ne.s32.totalorder %s155, %s169
    %p171 = scmp.eq.s32.totalorder %s19, 0
    %p172 = por %p170, %p171
    %s173 = ssub.s32 %s13, %s20
    %p174 = scmp.eq.s32.totalorder %s173, 0
    %s176 = sadd.s32 %s175, 1
    %s177 = scalar_select %p174, %s175, %s176
    %p180 = pneg %p174
    %p181 = scmp.eq.s32.totalorder %s13, 3
    %p182 = por %p180, %p181
    %p183 = scmp.ne.s32.totalorder %s175, %s178
    %p184 = scmp.eq.s32.totalorder %s13, 0
    %p185 = por %p183, %p184
    %p186 = scmp.ne.s32.totalorder %s175, %s178
    %p187 = scmp.eq.s32.totalorder %s18, 3
    %p188 = por %p186, %p187
    %p189 = scmp.ne.s32.totalorder %s178, %s179
    %p190 = scmp.eq.s32.totalorder %s18, 0
    %p191 = por %p189, %p190
    %p192 = scmp.ne.s32.totalorder %s178, %s179
    %p193 = scmp.eq.s32.totalorder %s19, 3
    %p194 = por %p192, %p193
    %p196 = scmp.ne.s32.totalorder %s179, %s195
    %p197 = scmp.eq.s32.totalorder %s19, 0
    %p198 = por %p196, %p197
    %p199 = scmp.le.s32.totalorder 1, %s13
    %p200 = scmp.lt.s32.totalorder %s13, 5
    %p201 = pnand %p199, %p200
    %p202 = pneg %p201
    // Predicated region
    $region9: #{bottleneck_pallas.1} parent=5 // pred_check
      _
    $region10: #{bottleneck_pallas.1} parent=5 // pred_check_branch
      %204 = sbr.rel (%p201) target = $region12
    $region11: #{bottleneck_pallas.1} parent=5 // pred_region
      %s205 = ssub.s32 %s13, 1
      // Predicated region
      $region13: #{bottleneck_pallas.1} parent=11 // pred_check
        %p206 = pneg %p60
      $region14: #{bottleneck_pallas.1} parent=11 // pred_check_branch
        %208 = sbr.rel (%p206) target = $region16
      $region15: #{bottleneck_pallas.1} parent=11 // pred_region
        _
      $region16: #{bottleneck_pallas.1} parent=11 // pred_fallthru
        _
      // Predicated region
      $region17: #{bottleneck_pallas.1} parent=11 // pred_check
        %p209 = pneg %p81
      $region18: #{bottleneck_pallas.1} parent=11 // pred_check_branch
        %211 = sbr.rel (%p209) target = $region20
      $region19: #{bottleneck_pallas.1} parent=11 // pred_region
        _
      $region20: #{bottleneck_pallas.1} parent=11 // pred_fallthru
        _
      // Predicated region
      $region21: #{bottleneck_pallas.1} parent=11 // pred_check
        %p212 = pneg %p102
      $region22: #{bottleneck_pallas.1} parent=11 // pred_check_branch
        %214 = sbr.rel (%p212) target = $region24
      $region23: #{bottleneck_pallas.1} parent=11 // pred_region
        _
      $region24: #{bottleneck_pallas.1} parent=11 // pred_fallthru
        _
      // Predicated region
      $region25: #{bottleneck_pallas.1} parent=11 // pred_check
        %p215 = pneg %p123
      $region26: #{bottleneck_pallas.1} parent=11 // pred_check_branch
        %217 = sbr.rel (%p215) target = $region28
      $region27: #{bottleneck_pallas.1} parent=11 // pred_region
        _
      $region28: #{bottleneck_pallas.1} parent=11 // pred_fallthru
        _
      // Predicated region
      $region29: #{bottleneck_pallas.1} parent=11 // pred_check
        %p218 = pneg %p144
      $region30: #{bottleneck_pallas.1} parent=11 // pred_check_branch
        %220 = sbr.rel (%p218) target = $region32
      $region31: #{bottleneck_pallas.1} parent=11 // pred_region
        _
      $region32: #{bottleneck_pallas.1} parent=11 // pred_fallthru
        _
      // Predicated region
      $region33: #{bottleneck_pallas.1} parent=11 // pred_check
        %p221 = pneg %p165
      $region34: #{bottleneck_pallas.1} parent=11 // pred_check_branch
        %223 = sbr.rel (%p221) target = $region36
      $region35: #{bottleneck_pallas.1} parent=11 // pred_region
        _
      $region36: #{bottleneck_pallas.1} parent=11 // pred_fallthru
        _
    $region12: #{bottleneck_pallas.1} parent=5 // pred_fallthru
      _
    %p224 = scmp.lt.s32.totalorder %s13, 4
    // Predicated region
    $region37: #{bottleneck_pallas.1} parent=5 // pred_check
      %p225 = pneg %p224
    $region38: #{bottleneck_pallas.1} parent=5 // pred_check_branch
      %227 = sbr.rel (%p225) target = $region40
    $region39: #{bottleneck_pallas.1} parent=5 // pred_region
      // Predicated region
      $region41: #{bottleneck_pallas.1} parent=39 // pred_check
        %p228 = pneg %p33
      $region42: #{bottleneck_pallas.1} parent=39 // pred_check_branch
        %230 = sbr.rel (%p228) target = $region44
      $region43: #{bottleneck_pallas.1} parent=39 // pred_region
        %p231 = scmp.lt.s32.totalorder %s13, 3
        %s232 = scalar_select %p231, %s13, 3
        %s233 = smul.addr %s232, 4
        %s234 = smul.addr %s233, 8
        %s235 = scalar_lea.vmem %s0, %s234
      $region44: #{bottleneck_pallas.1} parent=39 // pred_fallthru
        _
    $region40: #{bottleneck_pallas.1} parent=5 // pred_fallthru
      _
    %p236 = scmp.le.s32.totalorder 1, %s13
    %p237 = scmp.lt.s32.totalorder %s13, 5
    %p238 = pnand %p236, %p237
    %p239 = pneg %p238
    // Predicated region
    $region45: #{bottleneck_pallas.1} parent=5 // pred_check
      _
    $region46: #{bottleneck_pallas.1} parent=5 // pred_check_branch
      %241 = sbr.rel (%p238) target = $region48
    $region47: #{bottleneck_pallas.1} parent=5 // pred_region
      %s242 = ssub.s32 %s13, 1
      %p243 = scmp.lt.s32.totalorder %s18, 3
      %s244 = scalar_select %p243, %s18, 3
      %s245 = smul.addr %s244, 4
      %s246 = smul.addr %s245, 8
      %s247 = scalar_lea.vmem %s0, %s246
      %p248 = pneg %p39
      %p249 = pneg %p36
      %p250 = pneg %p60
      %p251 = pneg %p57
      %p252 = pneg %p81
      %p253 = pneg %p78
      %p254 = pneg %p102
      %p255 = pneg %p99
      %p256 = pneg %p123
      %p257 = pneg %p120
      %p258 = pneg %p144
      %p259 = pneg %p141
      %p260 = pneg %p165
      %p261 = pneg %p162
      %p262 = pneg %p191
      %p263 = pneg %p188
      %p264 = scmp.lt.s32.totalorder %s18, 3
      %s265 = scalar_select %p264, %s18, 3
      %s266 = smul.addr %s265, 4
      %s267 = smul.addr %s266, 8
      %s268 = scalar_lea.vmem %s7, %s267
      %p269 = scmp.lt.s32.totalorder %s18, 3
      %s270 = scalar_select %p269, %s18, 3
      %s271 = smul.addr %s270, 4
      %s272 = smul.addr %s271, 8
      %s273 = scalar_lea.vmem %s0, %s272
      %p274 = scmp.lt.s32.totalorder %s18, 3
      %s275 = scalar_select %p274, %s18, 3
      %s276 = smul.addr %s275, 4
      %s277 = smul.addr %s276, 8
      %s278 = scalar_lea.vmem %s7, %s277
      %v279 = vld [vmem:[%s1] sm:$0xff]
      %v280 = vld [vmem:[%s273] sm:$0xff]
      %v281 = vld [vmem:[%s273 + $0x8] sm:$0xff]
      %v282 = vld [vmem:[%s273 + $0x10] sm:$0xff]
      %v283 = vld [vmem:[%s273 + $0x18] sm:$0xff]
      %v284 = vld [vmem:[%s2] sm:$0xff]
      %286 = vset.pattern.permute.xlu0 0
      %287 = vperm.xlu0 %286, %v284
      %v288 = vpop.permute.xlu0 %287
      %vm290 = vcmask 130048
      %v292 = vsel %vm290, %v279, 0
      %294 = vmatpush.msra.mxu0 0.0
      %295 = vmatpush.msra.mxu0 0.0
      %296 = vmatpush.msra.mxu0 0.0
      %297 = vmatpush.msra.mxu0 0.0
      %298 = vmatpush.msra.mxu0 0.0
      %299 = vmatpush.msra.mxu0 0.0
      %300 = vmatpush.msra.mxu0 0.0
      %301 = vmatpush.msra.mxu0 0.0
      %302 = vmatpush.msra.mxu0 0.0
      %303 = vmatpush.msra.mxu0 0.0
      %304 = vmatpush.msra.mxu0 0.0
      %305 = vmatpush.msra.mxu0 0.0
      %306 = vmatpush.msra.mxu0 0.0
      %307 = vmatpush.msra.mxu0 0.0
      %308 = vmatpush.msra.mxu0 %v282
      %309 = vmatpush.msra.mxu0 %v280
      %310 = vmatmul.f32.gmra.mxu0 %v292
      %v311 = vpop.f32.mrf.mxu0
      %v312 = vadd.f32 %v288, %v311
      %313 = vdwg.mxu0
      %314 = vmatpush.msra.mxu0 0.0
      %315 = vmatpush.msra.mxu0 0.0
      %316 = vmatpush.msra.mxu0 0.0
      %317 = vmatpush.msra.mxu0 0.0
      %318 = vmatpush.msra.mxu0 0.0
      %319 = vmatpush.msra.mxu0 0.0
      %320 = vmatpush.msra.mxu0 0.0
      %321 = vmatpush.msra.mxu0 0.0
      %322 = vmatpush.msra.mxu0 0.0
      %323 = vmatpush.msra.mxu0 0.0
      %324 = vmatpush.msra.mxu0 0.0
      %325 = vmatpush.msra.mxu0 0.0
      %326 = vmatpush.msra.mxu0 0.0
      %327 = vmatpush.msra.mxu0 0.0
      %328 = vmatpush.msra.mxu0 %v283
      %329 = vmatpush.msra.mxu0 %v281
      %330 = vmatmul.f32.gmra.mxu0 %v292
      %v331 = vpop.f32.mrf.mxu0
      %v332 = vadd.f32 %v288, %v331
      %333 = vdwg.mxu0
      %v334 = vmax.f32 %v312, 0.0
      %v335 = vmax.f32 %v332, 0.0
      %v336 = vlaneseq
      %v337 = vand.u32 %v336, 127
      %v338 = vadd.s32 %v337, 128
      %v339 = vand.u32 %v337, 15
      %v340 = vand.u32 %v338, 15
      %vm341 = vcmp.ne.s32.totalorder %v339, 15
      %vm342 = vcmp.ne.s32.totalorder %v340, 15
      %v343 = vsel %vm341, 1, 0
      %v344 = vsel %vm342, 1, 0
      %vm345 = vcmp.eq.s32.totalorder %v343, 1
      %vm346 = vcmp.eq.s32.totalorder %v344, 1
      %v347 = vsel %vm345, %v334, 0.0
      %v348 = vsel %vm346, %v335, 0.0
      %vm349 = vcmp.ne.s32.totalorder %v339, 0
      %vm350 = vcmp.ne.s32.totalorder %v340, 0
      %v351 = vsel %vm349, 1, 0
      %v352 = vsel %vm350, 1, 0
      %vm353 = vcmp.eq.s32.totalorder %v351, 1
      %vm354 = vcmp.eq.s32.totalorder %v352, 1
      %v355 = vsel %vm353, %v334, 0.0
      %v356 = vsel %vm354, %v335, 0.0
      %357 = vst [vmem:[#allocation2] sm:$0xff] 0.0
      %358 = vst [vmem:[#allocation2 + $0x20] sm:$0xff] 0.0
      %359 = vst [vmem:[#allocation2 + $0x40] sm:$0xff] 0.0
      %360 = vst [vmem:[#allocation2 + $0x18] sm:$0xff] 0.0
      %361 = vst [vmem:[#allocation2 + $0x38] sm:$0xff] 0.0
      %362 = vst [vmem:[#allocation2 + $0x58] sm:$0xff] 0.0
      %363 = vst [vmem:[#allocation2 + $0x8] sm:$0xff] %v347
      %364 = vst [vmem:[#allocation2 + $0x10] sm:$0xff] %v348
      %365 = vst [vmem:[#allocation2 + $0x28] sm:$0xff] %v334
      %366 = vst [vmem:[#allocation2 + $0x30] sm:$0xff] %v335
      %367 = vst [vmem:[#allocation2 + $0x48] sm:$0xff] %v355
      %368 = vst [vmem:[#allocation2 + $0x50] sm:$0xff] %v356
      %v369 = vld [vmem:[#allocation2] sm:$0xff]
      %v370 = vld [vmem:[#allocation2 + $0x8] sm:$0xff]
      %v371 = vld [vmem:[#allocation2 + $0x10] sm:$0xff]
      %375 = vrot.lane.b32.xlu0 %v369, 17
      %v376 = vpop.permute.xlu0 %375
      %377 = vrot.lane.b32.xlu0 %v370, 17
      %v378 = vpop.permute.xlu0 %377
      %379 = vrot.lane.b32.xlu0 %v371, 17
      %v380 = vpop.permute.xlu0 %379
      %vm381 = vcmask 138240
      %v382 = vsel %vm381, %v376, %v378
      %v383 = vsel %vm381, %v378, %v380
      %386 = vst [vmem:[#allocation3] sm:$0xff] %v382
      %387 = vst [vmem:[#allocation3 + $0x8] sm:$0xff] %v383
      %v388 = vld [vmem:[#allocation2 + $0x20] sm:$0xff]
      %v389 = vld [vmem:[#allocation2 + $0x28] sm:$0xff]
      %v390 = vld [vmem:[#allocation2 + $0x30] sm:$0xff]
      %394 = vrot.lane.b32.xlu0 %v388, 16
      %v395 = vpop.permute.xlu0 %394
      %396 = vrot.lane.b32.xlu0 %v389, 16
      %v397 = vpop.permute.xlu0 %396
      %398 = vrot.lane.b32.xlu0 %v390, 16
      %v399 = vpop.permute.xlu0 %398
      %v400 = vsel %vm290, %v395, %v397
      %v401 = vsel %vm290, %v397, %v399
      %404 = vst [vmem:[#allocation3 + $0x10] sm:$0xff] %v400
      %405 = vst [vmem:[#allocation3 + $0x18] sm:$0xff] %v401
      %v406 = vld [vmem:[#allocation2 + $0x40] sm:$0xff]
      %v407 = vld [vmem:[#allocation2 + $0x48] sm:$0xff]
      %v408 = vld [vmem:[#allocation2 + $0x50] sm:$0xff]
      %412 = vrot.lane.b32.xlu0 %v406, 15
      %v413 = vpop.permute.xlu0 %412
      %414 = vrot.lane.b32.xlu0 %v407, 15
      %v415 = vpop.permute.xlu0 %414
      %416 = vrot.lane.b32.xlu0 %v408, 15
      %v417 = vpop.permute.xlu0 %416
      %vm418 = vcmask 121856
      %v419 = vsel %vm418, %v413, %v415
      %v420 = vsel %vm418, %v415, %v417
      %423 = vst [vmem:[#allocation3 + $0x20] sm:$0xff] %v419
      %424 = vst [vmem:[#allocation3 + $0x28] sm:$0xff] %v420
      %v425 = vld [vmem:[#allocation2] sm:$0xff]
      %v426 = vld [vmem:[#allocation2 + $0x8] sm:$0xff]
      %v427 = vld [vmem:[#allocation2 + $0x10] sm:$0xff]
      %431 = vrot.lane.b32.xlu0 %v425, 1
      %v432 = vpop.permute.xlu0 %431
      %433 = vrot.lane.b32.xlu0 %v426, 1
      %v434 = vpop.permute.xlu0 %433
      %435 = vrot.lane.b32.xlu0 %v427, 1
      %v436 = vpop.permute.xlu0 %435
      %vm437 = vcmask 7168
      %v438 = vsel %vm437, %v432, %v434
      %v439 = vsel %vm437, %v434, %v436
      %442 = vst [vmem:[#allocation3 + $0x30] sm:$0xff] %v438
      %443 = vst [vmem:[#allocation3 + $0x38] sm:$0xff] %v439
      %v444 = vld [vmem:[#allocation2 + $0x28] sm:$0xff]
      %v445 = vld [vmem:[#allocation2 + $0x30] sm:$0xff]
      %446 = vst [vmem:[#allocation3 + $0x40] sm:$0xff] %v444
      %447 = vst [vmem:[#allocation3 + $0x48] sm:$0xff] %v445
      %v448 = vld [vmem:[#allocation2 + $0x48] sm:$0xff]
      %v449 = vld [vmem:[#allocation2 + $0x50] sm:$0xff]
      %v450 = vld [vmem:[#allocation2 + $0x58] sm:$0xff]
      %454 = vrot.lane.b32.xlu0 %v448, 127
      %v455 = vpop.permute.xlu0 %454
      %456 = vrot.lane.b32.xlu0 %v449, 127
      %v457 = vpop.permute.xlu0 %456
      %458 = vrot.lane.b32.xlu0 %v450, 127
      %v459 = vpop.permute.xlu0 %458
      %vm460 = vcmask 1039360
      %v461 = vsel %vm460, %v455, %v457
      %v462 = vsel %vm460, %v457, %v459
      %465 = vst [vmem:[#allocation3 + $0x50] sm:$0xff] %v461
      %466 = vst [vmem:[#allocation3 + $0x58] sm:$0xff] %v462
      %v467 = vld [vmem:[#allocation2 + $0x8] sm:$0xff]
      %v468 = vld [vmem:[#allocation2 + $0x10] sm:$0xff]
      %v469 = vld [vmem:[#allocation2 + $0x18] sm:$0xff]
      %473 = vrot.lane.b32.xlu0 %v467, 113
      %v474 = vpop.permute.xlu0 %473
      %475 = vrot.lane.b32.xlu0 %v468, 113
      %v476 = vpop.permute.xlu0 %475
      %477 = vrot.lane.b32.xlu0 %v469, 113
      %v478 = vpop.permute.xlu0 %477
      %vm479 = vcmask 924672
      %v480 = vsel %vm479, %v474, %v476
      %v481 = vsel %vm479, %v476, %v478
      %484 = vst [vmem:[#allocation3 + $0x60] sm:$0xff] %v480
      %485 = vst [vmem:[#allocation3 + $0x68] sm:$0xff] %v481
      %v486 = vld [vmem:[#allocation2 + $0x28] sm:$0xff]
      %v487 = vld [vmem:[#allocation2 + $0x30] sm:$0xff]
      %v488 = vld [vmem:[#allocation2 + $0x38] sm:$0xff]
      %492 = vrot.lane.b32.xlu0 %v486, 112
      %v493 = vpop.permute.xlu0 %492
      %494 = vrot.lane.b32.xlu0 %v487, 112
      %v495 = vpop.permute.xlu0 %494
      %496 = vrot.lane.b32.xlu0 %v488, 112
      %v497 = vpop.permute.xlu0 %496
      %vm498 = vcmask 916480
      %v499 = vsel %vm498, %v493, %v495
      %v500 = vsel %vm498, %v495, %v497
      %503 = vst [vmem:[#allocation3 + $0x70] sm:$0xff] %v499
      %504 = vst [vmem:[#allocation3 + $0x78] sm:$0xff] %v500
      %v505 = vld [vmem:[#allocation2 + $0x48] sm:$0xff]
      %v506 = vld [vmem:[#allocation2 + $0x50] sm:$0xff]
      %v507 = vld [vmem:[#allocation2 + $0x58] sm:$0xff]
      %511 = vrot.lane.b32.xlu0 %v505, 111
      %v512 = vpop.permute.xlu0 %511
      %513 = vrot.lane.b32.xlu0 %v506, 111
      %v514 = vpop.permute.xlu0 %513
      %515 = vrot.lane.b32.xlu0 %v507, 111
      %v516 = vpop.permute.xlu0 %515
      %vm517 = vcmask 908288
      %v518 = vsel %vm517, %v512, %v514
      %v519 = vsel %vm517, %v514, %v516
      %522 = vst [vmem:[#allocation3 + $0x80] sm:$0xff] %v518
      %523 = vst [vmem:[#allocation3 + $0x88] sm:$0xff] %v519
      %v524 = vld [vmem:[%s3] sm:$0xff]
      %v525 = vld [vmem:[#allocation3] sm:$0xff]
      %v526 = vld [vmem:[#allocation3 + $0x8] sm:$0xff]
      %v527 = vld [vmem:[#allocation3 + $0x10] sm:$0xff]
      %v528 = vld [vmem:[#allocation3 + $0x18] sm:$0xff]
      %v529 = vld [vmem:[#allocation3 + $0x20] sm:$0xff]
      %v530 = vld [vmem:[#allocation3 + $0x28] sm:$0xff]
      %v531 = vld [vmem:[#allocation3 + $0x30] sm:$0xff]
      %v532 = vld [vmem:[#allocation3 + $0x38] sm:$0xff]
      %v533 = vld [vmem:[#allocation3 + $0x40] sm:$0xff]
      %v534 = vld [vmem:[#allocation3 + $0x48] sm:$0xff]
      %v535 = vld [vmem:[#allocation3 + $0x50] sm:$0xff]
      %v536 = vld [vmem:[#allocation3 + $0x58] sm:$0xff]
      %v537 = vld [vmem:[#allocation3 + $0x60] sm:$0xff]
      %v538 = vld [vmem:[#allocation3 + $0x68] sm:$0xff]
      %v539 = vld [vmem:[#allocation3 + $0x70] sm:$0xff]
      %v540 = vld [vmem:[#allocation3 + $0x78] sm:$0xff]
      %v541 = vld [vmem:[#allocation3 + $0x80] sm:$0xff]
      %v542 = vld [vmem:[#allocation3 + $0x88] sm:$0xff]
      %v543 = vld [vmem:[%s4] sm:$0xff]
      %545 = vset.pattern.permute.xlu0 0
      %546 = vperm.xlu0 %545, %v543
      %v547 = vpop.permute.xlu0 %546
      %vm549 = vcmask 588800
      %v551 = vsel %vm549, %v524, 0
      %553 = vmatpush.msra.mxu0 0.0
      %554 = vmatpush.msra.mxu0 0.0
      %555 = vmatpush.msra.mxu0 0.0
      %556 = vmatpush.msra.mxu0 0.0
      %557 = vmatpush.msra.mxu0 0.0
      %558 = vmatpush.msra.mxu0 0.0
      %559 = vmatpush.msra.mxu0 0.0
      %560 = vmatpush.msra.mxu0 %v541
      %561 = vmatpush.msra.mxu0 %v539
      %562 = vmatpush.msra.mxu0 %v537
      %563 = vmatpush.msra.mxu0 %v535
      %564 = vmatpush.msra.mxu0 %v533
      %565 = vmatpush.msra.mxu0 %v531
      %566 = vmatpush.msra.mxu0 %v529
      %567 = vmatpush.msra.mxu0 %v527
      %568 = vmatpush.msra.mxu0 %v525
      %569 = vmatmul.f32.gmra.mxu0 %v551
      %v570 = vpop.f32.mrf.mxu0
      %v571 = vadd.f32 %v547, %v570
      %572 = vdwg.mxu0
      %573 = vmatpush.msra.mxu0 0.0
      %574 = vmatpush.msra.mxu0 0.0
      %575 = vmatpush.msra.mxu0 0.0
      %576 = vmatpush.msra.mxu0 0.0
      %577 = vmatpush.msra.mxu0 0.0
      %578 = vmatpush.msra.mxu0 0.0
      %579 = vmatpush.msra.mxu0 0.0
      %580 = vmatpush.msra.mxu0 %v542
      %581 = vmatpush.msra.mxu0 %v540
      %582 = vmatpush.msra.mxu0 %v538
      %583 = vmatpush.msra.mxu0 %v536
      %584 = vmatpush.msra.mxu0 %v534
      %585 = vmatpush.msra.mxu0 %v532
      %586 = vmatpush.msra.mxu0 %v530
      %587 = vmatpush.msra.mxu0 %v528
      %588 = vmatpush.msra.mxu0 %v526
      %589 = vmatmul.f32.gmra.mxu0 %v551
      %v590 = vpop.f32.mrf.mxu0
      %v591 = vadd.f32 %v547, %v590
      %592 = vdwg.mxu0
      %v593 = vmax.f32 %v571, 0.0
      %v594 = vmax.f32 %v591, 0.0
      %v595 = vld [vmem:[%s5] sm:$0xff]
      %v596 = vld [vmem:[%s5 + $0x8] sm:$0xff]
      %v597 = vld [vmem:[%s6] sm:$0xff]
      %v598 = vld [vmem:[%s6 + $0x8] sm:$0xff]
      %600 = vset.pattern.permute.xlu0 0
      %601 = vperm.xlu0 %600, %v597
      %v602 = vpop.permute.xlu0 %601
      %605 = vset.pattern.permute.xlu0 0
      %606 = vperm.xlu0 %605, %v598
      %v607 = vpop.permute.xlu0 %606
      %vm609 = vcmask 64512
      %v611 = vsel %vm609, %v595, 0
      %v614 = vsel %vm609, %v596, 0
      %616 = vmatpush.msra.mxu0 0.0
      %617 = vmatpush.msra.mxu0 0.0
      %618 = vmatpush.msra.mxu0 0.0
      %619 = vmatpush.msra.mxu0 0.0
      %620 = vmatpush.msra.mxu0 0.0
      %621 = vmatpush.msra.mxu0 0.0
      %622 = vmatpush.msra.mxu0 0.0
      %623 = vmatpush.msra.mxu0 0.0
      %624 = vmatpush.msra.mxu0 0.0
      %625 = vmatpush.msra.mxu0 0.0
      %626 = vmatpush.msra.mxu0 0.0
      %627 = vmatpush.msra.mxu0 0.0
      %628 = vmatpush.msra.mxu0 0.0
      %629 = vmatpush.msra.mxu0 0.0
      %630 = vmatpush.msra.mxu0 0.0
      %631 = vmatpush.msra.mxu0 %v593
      %632 = vmatmul.f32.gmra.mxu0 %v611
      %v633 = vpop.f32.mrf.mxu0
      %v634 = vadd.f32 %v602, %v633
      %635 = vmatmul.f32.gmra.mxu0 %v614
      %v636 = vpop.f32.mrf.mxu0
      %v637 = vadd.f32 %v607, %v636
      %638 = vdwg.mxu0
      %639 = vmatpush.msra.mxu0 0.0
      %640 = vmatpush.msra.mxu0 0.0
      %641 = vmatpush.msra.mxu0 0.0
      %642 = vmatpush.msra.mxu0 0.0
      %643 = vmatpush.msra.mxu0 0.0
      %644 = vmatpush.msra.mxu0 0.0
      %645 = vmatpush.msra.mxu0 0.0
      %646 = vmatpush.msra.mxu0 0.0
      %647 = vmatpush.msra.mxu0 0.0
      %648 = vmatpush.msra.mxu0 0.0
      %649 = vmatpush.msra.mxu0 0.0
      %650 = vmatpush.msra.mxu0 0.0
      %651 = vmatpush.msra.mxu0 0.0
      %652 = vmatpush.msra.mxu0 0.0
      %653 = vmatpush.msra.mxu0 0.0
      %654 = vmatpush.msra.mxu0 %v594
      %655 = vmatmul.f32.gmra.mxu0 %v611
      %v656 = vpop.f32.mrf.mxu0
      %v657 = vadd.f32 %v602, %v656
      %658 = vmatmul.f32.gmra.mxu0 %v614
      %v659 = vpop.f32.mrf.mxu0
      %v660 = vadd.f32 %v607, %v659
      %661 = vdwg.mxu0
      %v662 = vld [vmem:[%s273] sm:$0xff]
      %v663 = vld [vmem:[%s273 + $0x8] sm:$0xff]
      %v664 = vld [vmem:[%s273 + $0x10] sm:$0xff]
      %v665 = vld [vmem:[%s273 + $0x18] sm:$0xff]
      %v666 = vadd.f32 %v634, %v662
      %v667 = vadd.f32 %v657, %v663
      %v668 = vadd.f32 %v637, %v664
      %v669 = vadd.f32 %v660, %v665
      %v670 = vmax.f32 %v666, 0.0
      %v671 = vmax.f32 %v667, 0.0
      %v672 = vmax.f32 %v668, 0.0
      %v673 = vmax.f32 %v669, 0.0
      %674 = vst [vmem:[%s278] sm:$0xff] %v670
      %675 = vst [vmem:[%s278 + $0x8] sm:$0xff] %v671
      %676 = vst [vmem:[%s278 + $0x10] sm:$0xff] %v672
      %677 = vst [vmem:[%s278 + $0x18] sm:$0xff] %v673
      %p678 = scmp.lt.s32.totalorder %s18, 3
      %s679 = scalar_select %p678, %s18, 3
      %s680 = smul.addr %s679, 4
      %s681 = smul.addr %s680, 8
      %s682 = scalar_lea.vmem %s7, %s681
      // Predicated region
      $region49: #{bottleneck_pallas.1} parent=47 // pred_check
        %p683 = pneg %p188
      $region50: #{bottleneck_pallas.1} parent=47 // pred_check_branch
        %685 = sbr.rel (%p683) target = $region52
      $region51: #{bottleneck_pallas.1} parent=47 // pred_region
        _
      $region52: #{bottleneck_pallas.1} parent=47 // pred_fallthru
        _
    $region48: #{bottleneck_pallas.1} parent=5 // pred_fallthru
      _
    %p686 = scmp.le.s32.totalorder 2, %s13
    // Predicated region
    $region53: #{bottleneck_pallas.1} parent=5 // pred_check
      %p687 = pneg %p686
    $region54: #{bottleneck_pallas.1} parent=5 // pred_check_branch
      %689 = sbr.rel (%p687) target = $region56
    $region55: #{bottleneck_pallas.1} parent=5 // pred_region
      %s690 = ssub.s32 %s13, 2
      // Predicated region
      $region57: #{bottleneck_pallas.1} parent=55 // pred_check
        %p691 = pneg %p194
      $region58: #{bottleneck_pallas.1} parent=55 // pred_check_branch
        %693 = sbr.rel (%p691) target = $region60
      $region59: #{bottleneck_pallas.1} parent=55 // pred_region
        %p694 = scmp.lt.s32.totalorder %s19, 3
        %s695 = scalar_select %p694, %s19, 3
        %s696 = smul.addr %s695, 4
        %s697 = smul.addr %s696, 8
        %s698 = scalar_lea.vmem %s7, %s697
      $region60: #{bottleneck_pallas.1} parent=55 // pred_fallthru
        _
    $region56: #{bottleneck_pallas.1} parent=5 // pred_fallthru
      _
  $region6: #{bottleneck_pallas.1} parent=0 // loop_footer
    %s17 = sadd.s32 1, %s13
  $region7: #{bottleneck_pallas.1} parent=0 // loop_footer_branch
    %12 = sbr.rel target = $region3
  $region8: #{bottleneck_pallas.1} parent=0 // loop_exit
    _

</llo_original>
